<compile_context>
chip_gen: v7x
topology: tpu7x:2x2x1
jax: 0.10.0
libtpu: 0.0.40
codegen_flags: <defaults>
</compile_context>

<pallas_src>
import functools

import jax
import jax.numpy as jnp
import numpy as np
from jax import lax
from jax.experimental import pallas as pl
from jax.experimental.pallas import tpu as pltpu

_LANE = 128
_SUBLANE = 8
# ~2 MiB per output block -> 4 MiB double-buffered: inside the default scoped
# VMEM on v5e (16 MiB) / v6e (32 MiB) / v7x (32 of 64 MiB physical) while big
# enough (>1 MiB) to sit near the HBM-write roofline on all three generations.
_MAX_BLOCK_BYTES = 2 * 1024 * 1024
_VMEM_LIMIT_BYTES = 32 * 1024 * 1024


def _erase_kernel(idx_ref, x_hbm_ref, o_ref, *, erase_value):
    # idx_ref:   SMEM int32[n] scalar-prefetched erase indices (consumed only
    #            by the output index_map).
    # x_hbm_ref: aliased input, left in HBM (memory_space=pl.ANY), never read.
    # o_ref:     lane/sublane-dense VMEM output block of the erased frame.
    del idx_ref, x_hbm_ref
    o_ref[...] = jnp.full(o_ref.shape, erase_value, dtype=o_ref.dtype)


def _erase_lane_dense(x3d, erase_idx, erase_value):
    """Primary path: x3d is [T, R, 128] (frame flattened to R rows of 128 lanes)."""
    T, R, L = x3d.shape
    n = erase_idx.shape[0]
    itemsize = jnp.dtype(x3d.dtype).itemsize
    max_rows = max(_SUBLANE, _MAX_BLOCK_BYTES // (L * itemsize))
    if R <= max_rows:
        r_tile = R                                   # full extent: always legal
    else:
        r_tile = (max_rows // _SUBLANE) * _SUBLANE   # sublane-dense tile
    n_row = pl.cdiv(R, r_tile)                       # partial last block masked

    kernel = functools.partial(_erase_kernel, erase_value=erase_value)
    return pl.pallas_call(
        kernel,
        out_shape=jax.ShapeDtypeStruct((T, R, L), x3d.dtype),
        grid_spec=pltpu.PrefetchScalarGridSpec(
            num_scalar_prefetch=1,
            # Frame axis major, row-tile axis minor: consecutive writebacks
            # cover contiguous HBM within one frame (long sequential DMA
            # write streams).
            grid=(n, n_row),
            in_specs=[pl.BlockSpec(memory_space=pl.ANY)],  # x stays in HBM, never read
            out_specs=pl.BlockSpec(
                (1, r_tile, L), lambda i, j, idx_ref: (idx_ref[i], j, 0)),
        ),
        # Alias x (input index 1; index 0 is the prefetched index vector) to
        # the output: frames never indexed by the grid stay untouched in place.
        input_output_aliases={1: 0},
        compiler_params=pltpu.CompilerParams(
            # Row-tile axis: static index map + disjoint blocks -> "parallel"
            # so v7x's two TensorCores split large frames.  The frame axis has
            # a data-dependent index map and stays "arbitrary" (extent is
            # typically 1 anyway).
            dimension_semantics=("arbitrary", "parallel"),
            vmem_limit_bytes=_VMEM_LIMIT_BYTES),
    )(erase_idx, x3d)


def _erase_rowmajor(x4d, erase_idx, erase_value):
    """Fallback for frames whose element count is not a multiple of 128.

    Tiles each erased frame as (C, h_tile, W) blocks: W is the (full-extent)
    lane dim, h_tile is a multiple of 8 (or full H), so the block stays legal
    and VMEM-bounded for any frame shape.
    """
    T, C, H, W = x4d.shape
    n = erase_idx.shape[0]
    itemsize = jnp.dtype(x4d.dtype).itemsize
    max_rows = max(1, _MAX_BLOCK_BYTES // max(1, C * W * itemsize))
    if H <= max(max_rows, _SUBLANE):
        h_tile = H                                   # full extent: always legal
    else:
        h_tile = max(_SUBLANE, (max_rows // _SUBLANE) * _SUBLANE)
    n_h = pl.cdiv(H, h_tile)

    kernel = functools.partial(_erase_kernel, erase_value=erase_value)
    return pl.pallas_call(
        kernel,
        out_shape=jax.ShapeDtypeStruct((T, C, H, W), x4d.dtype),
        grid_spec=pltpu.PrefetchScalarGridSpec(
            num_scalar_prefetch=1,
            grid=(n, n_h),
            in_specs=[pl.BlockSpec(memory_space=pl.ANY)],
            out_specs=pl.BlockSpec(
                (1, C, h_tile, W), lambda i, h, idx_ref: (idx_ref[i], 0, h, 0)),
        ),
        input_output_aliases={1: 0},
        compiler_params=pltpu.CompilerParams(
            dimension_semantics=("arbitrary", "parallel"),
            vmem_limit_bytes=_VMEM_LIMIT_BYTES),
    )(erase_idx, x4d)


@functools.partial(
    jax.jit,
    static_argnames=("erase_prob", "n", "erase_value"),
    donate_argnames=("x",),
)
def _random_temporal_erase(x, key, *, erase_prob, n, erase_value):
    T, C, H, W = x.shape
    chw = C * H * W
    k_apply, k_sample = jax.random.split(key)

    # PyTorch: `if random.random() > erase_prob: return x`  ->  apply iff <=.
    apply = jax.random.uniform(k_apply, ()) <= erase_prob
    # random.sample(range(T), n): distinct indices, without replacement.
    erase_idx = jax.random.choice(k_sample, T, shape=(n,), replace=False)
    erase_idx = erase_idx.astype(jnp.int32)

    def _erase(xx):
        if chw % _LANE == 0:
            out3d = _erase_lane_dense(
                xx.reshape(T, chw // _LANE, _LANE), erase_idx, erase_value)
            return out3d.reshape(T, C, H, W)
        return _erase_rowmajor(xx, erase_idx, erase_value)

    # TODO(synk): inspect compiled HLO to confirm cond + donation + aliasing
    # does not insert a defensive full copy of x on either branch.
    return lax.cond(apply, _erase, lambda xx: xx, x)


class RandomTemporalErasing:
    """JAX/Pallas port of the PyTorch RandomTemporalErasing module."""

    def __init__(self, erase_prob=0.5, num_frames_to_erase=1, erase_value=0.0):
        self.erase_prob = float(erase_prob)
        self.num_frames_to_erase = int(num_frames_to_erase)
        self.erase_value = float(erase_value)
        self.training = True

    def __call__(self, x, key):
        """x: [T, C, H, W]; `key` replaces python `random` for determinism.

        NOTE: x is donated (the erase happens in place on the erase branch);
        do not reuse the `x` device buffer after calling.
        """
        if not self.training:
            return x
        T = x.shape[0]
        n = min(self.num_frames_to_erase, T)
        if n <= 0:
            return x
        return _random_temporal_erase(
            x, key, erase_prob=self.erase_prob, n=n,
            erase_value=self.erase_value)


if __name__ == "__main__":
    root = jax.random.PRNGKey(0)
    k1, kc1, k2, kc2, k3, kc3 = jax.random.split(root, 6)

    # --- Case 1: lane-dense primary path (CHW % 128 == 0), forced erase. ---
    T, C, H, W = 8, 4, 16, 16
    x1 = jax.random.normal(k1, (T, C, H, W), dtype=jnp.float32)
    x1_host = np.asarray(jax.device_get(x1))       # host copy: x1 is donated
    mod1 = RandomTemporalErasing(erase_prob=1.0, num_frames_to_erase=2,
                                 erase_value=0.0)
    out1 = np.asarray(jax.device_get(jax.block_until_ready(mod1(x1, kc1))))
    assert out1.shape == (T, C, H, W)
    erased1 = [t for t in range(T) if np.all(out1[t] == 0.0)]
    assert len(erased1) == 2, f"expected 2 erased frames, got {erased1}"
    for t in range(T):
        if t not in erased1:
            assert np.array_equal(out1[t], x1_host[t]), f"frame {t} modified"

    # --- Case 2: 4-D fallback path (CHW % 128 != 0), non-zero erase value. ---
    T2, C2, H2, W2 = 6, 3, 5, 7
    x2 = jax.random.normal(k2, (T2, C2, H2, W2), dtype=jnp.float32)
    x2_host = np.asarray(jax.device_get(x2))
    mod2 = RandomTemporalErasing(erase_prob=1.0, num_frames_to_erase=3,
                                 erase_value=-1.5)
    out2 = np.asarray(jax.device_get(jax.block_until_ready(mod2(x2, kc2))))
    erased2 = [t for t in range(T2) if np.all(out2[t] == -1.5)]
    assert len(erased2) == 3, f"expected 3 erased frames, got {erased2}"
    for t in range(T2):
        if t not in erased2:
            assert np.array_equal(out2[t], x2_host[t]), f"frame {t} modified"

    # --- Case 3: no-op branch (erase_prob = 0) leaves x unchanged. ---
    x3 = jax.random.normal(k3, (T, C, H, W), dtype=jnp.float32)
    x3_host = np.asarray(jax.device_get(x3))
    mod3 = RandomTemporalErasing(erase_prob=0.0, num_frames_to_erase=2,
                                 erase_value=0.0)
    out3 = np.asarray(jax.device_get(jax.block_until_ready(mod3(x3, kc3))))
    assert np.array_equal(out3, x3_host), "no-op branch modified x"

    print("KERNEL_OK")
</pallas_src>

<mosaic_0001>
module attributes {stable_mosaic.version = 11 : i64} {
  func.func @_erase_kernel(%arg0: i32, %arg1: i32, %arg2: memref<2xi32, #tpu.memory_space<smem>>, %arg3: memref<8x8x128xf32, #tpu.memory_space<any>>, %arg4: memref<1x8x128xf32, #tpu.memory_space<vmem>>) attributes {dimension_semantics = [#tpu.dimension_semantics<arbitrary>, #tpu.dimension_semantics<parallel>], iteration_bounds = array<i64: 2, 1>, scalar_prefetch = 1 : i64, scratch_operands = 0 : i64, tpu.core_type = #tpu.core_type<tc>, window_params = [{}, {transform_indices = @transform_1, window_bounds = array<i64: 1, 8, 128>}]} {
    %cst = arith.constant 0.000000e+00 : f32
    %0 = vector.broadcast %cst : f32 to vector<1x8x128xf32>
    %c0 = arith.constant 0 : index
    %c0_0 = arith.constant 0 : index
    %c0_1 = arith.constant 0 : index
    %1 = vector.load %arg4[%c0, %c0_0, %c0_1] : memref<1x8x128xf32, #tpu.memory_space<vmem>>, vector<1x8x128xf32>
    tpu.vector_store %arg4[%c0, %c0_0, %c0_1], %0 {strides = array<i32>} : memref<1x8x128xf32, #tpu.memory_space<vmem>>, vector<1x8x128xf32>,
    return
  }
  func.func @transform_1(%arg0: i32, %arg1: i32, %arg2: memref<2xi32, #tpu.memory_space<smem>>) -> (i32, i32, i32) {
    %0 = arith.index_cast %arg0 : i32 to index
    %1 = memref.load %arg2[%0] : memref<2xi32, #tpu.memory_space<smem>>
    %c0_i32 = arith.constant 0 : i32
    %c0_i32_0 = arith.constant 0 : i32
    return %1, %arg1, %c0_i32 : i32, i32, i32
  }
}

</mosaic_0001>

<llo_original>
// kernel: branch_1_fun.1
$region0: #{branch_1_fun.1}
  #allocation0 [shape = 'u32[]', space=smem, size = 0x4, offset = 0x4, fixed_abs, tag = 'smem constant byte address 0x4 - core index']
  #allocation1 [shape = 'u32[144,128]{1,0:T(1,128)}', space=vmem, size = 0x12000, scoped, tag = 'internal scratch']
  #allocation2 [shape = 's32[1]{0}', space=sflag, size = 0x4, scoped, tag = 'scoped memory for branch_1_fun.1']
  #allocation3 [shape = 'u8[512]{0}', space=smem, size = 0x200, scoped, tag = 'prefetched SMEM operand 0']
  %s0 = inlined_call_operand.vmem [shape: s32[2], index: 0, kind: input, shape index: {}]
  %s1 = inlined_call_operand.vmem [shape: f32[8,8,128], index: 1, kind: input, shape index: {}, may-alias: {1,2}]
  %s2 = inlined_call_operand.vmem [shape: f32[8,8,128], index: 2, kind: output, shape index: {}, may-alias: {1,2}]
  %s3 = sld [smem:[#allocation0]]
  $region25: #{branch_1_fun.1} parent=0
    _
  %s5 = ssub.s32 1, %s3
  %s6 = scalar_select 0, %s5, %s3
  %s7 = sshll.u32 %s0, 4
  %s8 = int_to_ptr.vmem [resolvable:$true] %s7
  %10 = dma.vmem_to_smem %s8, 16, [#allocation3], [#allocation2]
  %11 = dma.done [#allocation2], 16
  %12 = sfence
  loop: start=0, step=1, limit=3
  $region2: #{branch_1_fun.1} parent=0 // loop_pre_header
    _
  $region3: #{branch_1_fun.1} parent=0 // loop_header
    %s14 = sphi 0, %s18
    %p15 = scmp.ge.s32.totalorder %s14, 3
    %s20 = sphi 0, %s30
    %s21 = sphi 0, %s26
    %s22 = sphi 0, %s20
    %s23 = sphi 0, %s21
    %s37 = sphi 0, %s39
    %s40 = sphi 0, %s37
    %s50 = sphi 0, %s40
  $region4: #{branch_1_fun.1} parent=0 // loop_header_branch
    %17 = sbr.rel (%p15) target = $region8
  $region5: #{branch_1_fun.1} parent=0 // loop_body
    %s19 = ssub.s32 %s14, 1
    %s24 = sadd.s32 1, %s21
    %p25 = scmp.ge.s32.totalorder %s24, 1
    %s26 = scalar_select %p25, 0, %s24
    %s27 = sadd.s32 1, %s20
    %s28 = scalar_select %p25, %s27, %s20
    %p29 = scmp.ge.s32.totalorder %s28, 2
    %s30 = scalar_select %p29, 0, %s28
    %s31 = sld [smem:[#allocation3 + %s20]]
    %s32 = sld [smem:[#allocation3 + %s30]]
    %s33 = ssub.s32 %s31, %s32
    %s34 = ssub.s32 %s21, %s26
    %s35 = sor.u32 %s33, %s34
    %p36 = scmp.eq.s32.totalorder %s35, 0
    %s38 = sadd.s32 %s37, 1
    %s39 = scalar_select %p36, %s37, %s38
    %p41 = pneg %p36
    %p42 = scmp.eq.s32.totalorder %s14, 1
    %p43 = por %p41, %p42
    %p44 = scmp.ne.s32.totalorder %s37, %s40
    %p45 = scmp.eq.s32.totalorder %s14, 0
    %p46 = por %p44, %p45
    %p47 = scmp.ne.s32.totalorder %s37, %s40
    %p48 = scmp.eq.s32.totalorder %s19, 1
    %p49 = por %p47, %p48
    %p51 = scmp.ne.s32.totalorder %s40, %s50
    %p52 = scmp.eq.s32.totalorder %s19, 0
    %p53 = por %p51, %p52
    %p54 = scmp.lt.s32.totalorder %s14, 2
    // Predicated region
    $region9: #{branch_1_fun.1} parent=5 // pred_check
      %p55 = pneg %p54
    $region10: #{branch_1_fun.1} parent=5 // pred_check_branch
      %57 = sbr.rel (%p55) target = $region12
    $region11: #{branch_1_fun.1} parent=5 // pred_region
      %p58 = pneg %p46
      %p59 = pneg %p43
      %s60 = sld [smem:[#allocation3 + %s20]]
      %p61 = scmp.lt.s32.totalorder %s60, 7
      %s62 = scalar_select %p61, %s60, 7
      %p63 = scmp.lt.s32.totalorder %s21, 0
      %s64 = scalar_select %p63, %s21, 0
      %s65 = sadd.s32 %s64, %s62
      %s66 = smul.addr %s65, 8
      %s67 = scalar_lea.vmem %s2, %s66
      %s68 = sld [smem:[#allocation3 + %s20]]
      %p69 = scmp.lt.s32.totalorder %s68, 7
      %s70 = scalar_select %p69, %s68, 7
      %p71 = scmp.lt.s32.totalorder %s21, 0
      %s72 = scalar_select %p71, %s21, 0
      %s73 = sadd.s32 %s72, %s70
      %s74 = smul.addr %s73, 8
      %s75 = scalar_lea.vmem %s2, %s74
      %s76 = sld [smem:[#allocation3 + %s20]]
      %77 = vst [vmem:[%s75] sm:$0xff] 0.0
      %s78 = sld [smem:[#allocation3 + %s20]]
      %p79 = scmp.lt.s32.totalorder %s78, 7
      %s80 = scalar_select %p79, %s78, 7
      %p81 = scmp.lt.s32.totalorder %s21, 0
      %s82 = scalar_select %p81, %s21, 0
      %s83 = sadd.s32 %s82, %s80
      %s84 = smul.addr %s83, 8
      %s85 = scalar_lea.vmem %s2, %s84
      // Predicated region
      $region13: #{branch_1_fun.1} parent=11 // pred_check
        %p86 = pneg %p43
      $region14: #{branch_1_fun.1} parent=11 // pred_check_branch
        %88 = sbr.rel (%p86) target = $region16
      $region15: #{branch_1_fun.1} parent=11 // pred_region
        %s89 = sld [smem:[#allocation3 + %s20]]
      $region16: #{branch_1_fun.1} parent=11 // pred_fallthru
        _
    $region12: #{branch_1_fun.1} parent=5 // pred_fallthru
      _
    %p90 = scmp.le.s32.totalorder 1, %s14
    // Predicated region
    $region17: #{branch_1_fun.1} parent=5 // pred_check
      %p91 = pneg %p90
    $region18: #{branch_1_fun.1} parent=5 // pred_check_branch
      %93 = sbr.rel (%p91) target = $region20
    $region19: #{branch_1_fun.1} parent=5 // pred_region
      %s94 = ssub.s32 %s14, 1
      // Predicated region
      $region21: #{branch_1_fun.1} parent=19 // pred_check
        %p95 = pneg %p49
      $region22: #{branch_1_fun.1} parent=19 // pred_check_branch
        %97 = sbr.rel (%p95) target = $region24
      $region23: #{branch_1_fun.1} parent=19 // pred_region
        %s98 = sld [smem:[#allocation3 + %s22]]
        %p99 = scmp.lt.s32.totalorder %s98, 7
        %s100 = scalar_select %p99, %s98, 7
        %p101 = scmp.lt.s32.totalorder %s23, 0
        %s102 = scalar_select %p101, %s23, 0
        %s103 = sadd.s32 %s102, %s100
        %s104 = smul.addr %s103, 8
        %s105 = scalar_lea.vmem %s2, %s104
      $region24: #{branch_1_fun.1} parent=19 // pred_fallthru
        _
    $region20: #{branch_1_fun.1} parent=5 // pred_fallthru
      _
  $region6: #{branch_1_fun.1} parent=0 // loop_footer
    %s18 = sadd.s32 1, %s14
  $region7: #{branch_1_fun.1} parent=0 // loop_footer_branch
    %13 = sbr.rel target = $region3
  $region8: #{branch_1_fun.1} parent=0 // loop_exit
    _

</llo_original>
